<compile_context>
chip_gen: v6e
topology: v6e:2x2x1
jax: 0.10.0
libtpu: 0.0.40
codegen_flags: <defaults>
</compile_context>

<pallas_src>
import functools

import jax
import jax.numpy as jnp
from jax.experimental import pallas as pl
from jax.experimental.pallas import tpu as pltpu

LANE = 128        # per-layer padded feature width (lane / MXU friendly)
N_LAYERS = 6
MAX_TB = 2048     # batch-tile ceiling; VMEM footprint stays tiny (<1 MiB tiles)


def _round_up(x, m):
    return ((x + m - 1) // m) * m


def _dqn_kernel(x_ref, w_ref, b_ref, o_ref, *, first_in_rows, out_cols):
    """Fused relu(fc1..fc5) -> fc6 on one [TB, state_dim_pad] batch tile.

    w_ref: [w_rows, 6*LANE] bf16 packed weights; layer i occupies columns
           [i*LANE, (i+1)*LANE), rows [0, in_dim_i), zeros elsewhere.
    b_ref: [1, 6*LANE] f32 packed biases, zero-padded per layer.
    Zero padding is exact, so padded lanes stay exactly 0 through every layer.
    """
    h = x_ref[...].astype(jnp.bfloat16)                 # [TB, state_dim_pad] bf16
    for i in range(N_LAYERS):
        rows = first_in_rows if i == 0 else LANE        # static slice sizes
        w = w_ref[0:rows, i * LANE:(i + 1) * LANE]      # bf16 [rows, 128]
        b = b_ref[0:1, i * LANE:(i + 1) * LANE]         # f32  [1, 128]
        y = jnp.dot(h, w, preferred_element_type=jnp.float32) + b  # f32 MXU acc
        if i < N_LAYERS - 1:
            h = jnp.maximum(y, 0.0).astype(jnp.bfloat16)  # bf16 inter-layer act
        else:
            h = y                                         # final layer stays f32
    # Narrow writeback: only the first out_cols lanes carry real Q-values.
    o_ref[...] = h[:, :out_cols].astype(o_ref.dtype)


def pack_dqn_params(weights, biases):
    """Pack 6 (w, b) pairs into one bf16 weight slab + one f32 bias slab.

    Call this ONCE per parameter update, not per forward call.
    """
    assert len(weights) == N_LAYERS and len(biases) == N_LAYERS
    state_dim = weights[0].shape[0]
    w_rows = max(LANE, _round_up(state_dim, 8))
    w_pack = jnp.zeros((w_rows, N_LAYERS * LANE), jnp.bfloat16)
    b_pack = jnp.zeros((1, N_LAYERS * LANE), jnp.float32)
    for i, (w, b) in enumerate(zip(weights, biases)):
        fin, fout = w.shape
        assert fin <= w_rows, f"layer {i}: fan_in {fin} > packed rows {w_rows}"
        assert fout <= LANE, f"layer {i}: fan_out {fout} > {LANE} not supported"
        w_pack = w_pack.at[:fin, i * LANE:i * LANE + fout].set(
            w.astype(jnp.bfloat16))
        b_pack = b_pack.at[:, i * LANE:i * LANE + fout].set(
            b.reshape(1, fout).astype(jnp.float32))
    return w_pack, b_pack


@functools.partial(jax.jit, static_argnames=("action_dim",))
def dqn_forward(x, w_pack, b_pack, *, action_dim):
    """x: [batch, state_dim] f32; w_pack/b_pack from pack_dqn_params.

    Returns f32 [batch, action_dim] Q-values.
    """
    batch, state_dim = x.shape

    # Pad the feature axis (only) to a sublane multiple; no-op for state_dim%8==0.
    state_dim_pad = _round_up(state_dim, 8)
    if state_dim_pad != state_dim:
        x = jnp.pad(x, ((0, 0), (0, state_dim_pad - state_dim)))

    w_rows = w_pack.shape[0]
    assert state_dim_pad <= w_rows, "x feature dim exceeds packed weight rows"
    assert action_dim <= LANE

    out_pad = max(8, _round_up(action_dim, 8))   # narrow, (8,128)-rule compliant

    # Batch tile: multiple of 8, at most MAX_TB, and at most ceil(batch/2) so
    # larger batches always give >=2 grid steps (keeps both v7x TCs busy).
    tb = min(MAX_TB, max(8, _round_up(pl.cdiv(batch, 2), 8)))
    grid = (pl.cdiv(batch, tb),)                 # ragged last block allowed

    kernel = functools.partial(
        _dqn_kernel, first_in_rows=state_dim_pad, out_cols=out_pad)

    out = pl.pallas_call(
        kernel,
        out_shape=jax.ShapeDtypeStruct((batch, out_pad), jnp.float32),
        grid=grid,
        in_specs=[
            pl.BlockSpec((tb, state_dim_pad), lambda i: (i, 0)),        # x tile
            pl.BlockSpec((w_rows, N_LAYERS * LANE), lambda i: (0, 0)),  # weights (resident)
            pl.BlockSpec((1, N_LAYERS * LANE), lambda i: (0, 0)),       # biases  (resident)
        ],
        out_specs=pl.BlockSpec((tb, out_pad), lambda i: (i, 0)),        # narrow Q writeback
        compiler_params=pltpu.CompilerParams(
            dimension_semantics=("parallel",)),                         # megacore on v7x
    )(x, w_pack, b_pack)

    return out if out_pad == action_dim else out[:, :action_dim]


def init_dqn_params(key, state_dim, action_dim):
    """PyTorch-style uniform(-1/sqrt(fan_in), 1/sqrt(fan_in)) init."""
    dims = [state_dim, 128, 96, 64, 32, 16, action_dim]
    weights, biases = [], []
    for i in range(N_LAYERS):
        fan_in, fan_out = dims[i], dims[i + 1]
        key, kw, kb = jax.random.split(key, 3)
        bound = 1.0 / jnp.sqrt(jnp.float32(fan_in))
        weights.append(
            jax.random.uniform(kw, (fan_in, fan_out), jnp.float32, -bound, bound))
        biases.append(
            jax.random.uniform(kb, (fan_out,), jnp.float32, -bound, bound))
    return weights, biases


def dqn_reference(x, weights, biases):
    """Plain-JAX reference with the kernel's exact mixed precision
    (bf16 weights + bf16 inter-layer activations, f32 accumulation)."""
    h = x.astype(jnp.bfloat16)
    for i in range(N_LAYERS):
        y = jnp.dot(h, weights[i].astype(jnp.bfloat16),
                    preferred_element_type=jnp.float32) + biases[i]
        h = jnp.maximum(y, 0.0).astype(jnp.bfloat16) if i < N_LAYERS - 1 else y
    return h


if __name__ == "__main__":
    state_dim, action_dim = 8, 4

    key = jax.random.PRNGKey(0)
    key, kx = jax.random.split(key)
    weights, biases = init_dqn_params(key, state_dim, action_dim)

    # Pack ONCE (hoisted out of the forward path).
    w_pack, b_pack = pack_dqn_params(weights, biases)

    # Small "acting" batch (single grid step, partial block).
    x_small = jax.random.normal(kx, (2, state_dim), jnp.float32)
    out_small = jax.block_until_ready(
        dqn_forward(x_small, w_pack, b_pack, action_dim=action_dim))
    ref_small = dqn_reference(x_small, weights, biases)
    assert out_small.shape == (2, action_dim)
    assert jnp.allclose(out_small, ref_small, atol=1e-2, rtol=1e-2)

    # Larger ragged "training" batch (2 grid steps, ragged last block, no pad).
    key, kx2 = jax.random.split(key)
    x_big = jax.random.normal(kx2, (1000, state_dim), jnp.float32)
    out_big = jax.block_until_ready(
        dqn_forward(x_big, w_pack, b_pack, action_dim=action_dim))
    ref_big = dqn_reference(x_big, weights, biases)
    assert out_big.shape == (1000, action_dim)
    assert jnp.allclose(out_big, ref_big, atol=1e-2, rtol=1e-2)

    print("KERNEL_OK")
</pallas_src>

<mosaic_0001>
module attributes {stable_mosaic.version = 11 : i64} {
  func.func @_dqn_kernel(%arg0: i32, %arg1: memref<8x8xf32, #tpu.memory_space<vmem>>, %arg2: memref<128x768xbf16, #tpu.memory_space<vmem>>, %arg3: memref<1x768xf32, #tpu.memory_space<vmem>>, %arg4: memref<8x8xf32, #tpu.memory_space<vmem>>) attributes {dimension_semantics = [#tpu.dimension_semantics<parallel>], iteration_bounds = array<i64: 1>, scalar_prefetch = 0 : i64, scratch_operands = 0 : i64, tpu.core_type = #tpu.core_type<tc>, window_params = [{transform_indices = @transform_0, window_bounds = array<i64: 8, 8>}, {pipeline_mode = #tpu.pipeline_mode<synchronous>, transform_indices = @transform_1, window_bounds = array<i64: 128, 768>}, {pipeline_mode = #tpu.pipeline_mode<synchronous>, transform_indices = @transform_2, window_bounds = array<i64: 1, 768>}, {transform_indices = @transform_3, window_bounds = array<i64: 8, 8>}]} {
    %c0 = arith.constant 0 : index
    %c0_0 = arith.constant 0 : index
    %0 = vector.load %arg1[%c0, %c0_0] : memref<8x8xf32, #tpu.memory_space<vmem>>, vector<8x8xf32>
    %1 = arith.truncf %0 : vector<8x8xf32> to vector<8x8xbf16>
    %c0_1 = arith.constant 0 : index
    %c0_2 = arith.constant 0 : index
    %2 = vector.load %arg2[%c0_1, %c0_2] : memref<128x768xbf16, #tpu.memory_space<vmem>>, vector<8x128xbf16>
    %c0_3 = arith.constant 0 : index
    %c0_4 = arith.constant 0 : index
    %3 = vector.load %arg3[%c0_3, %c0_4] : memref<1x768xf32, #tpu.memory_space<vmem>>, vector<1x128xf32>
    %cst = arith.constant dense<0.000000e+00> : vector<8x128xf32>
    %4 = tpu.matmul %1, %2, %cst {dimension_numbers = #tpu.dot_dimension_numbers<[1], [0], [0], [1], [0, 0, 1, 1], [], []>} : vector<8x8xbf16>, vector<8x128xbf16>, vector<8x128xf32> -> vector<8x128xf32>
    %5 = vector.broadcast %3 : vector<1x128xf32> to vector<8x128xf32>
    %6 = arith.addf %4, %5 : vector<8x128xf32>
    %cst_5 = arith.constant 0.000000e+00 : f32
    %7 = vector.broadcast %cst_5 : f32 to vector<8x128xf32>
    %8 = arith.maximumf %6, %7 : vector<8x128xf32>
    %9 = arith.truncf %8 : vector<8x128xf32> to vector<8x128xbf16>
    %c0_6 = arith.constant 0 : index
    %c128 = arith.constant 128 : index
    %10 = vector.load %arg2[%c0_6, %c128] : memref<128x768xbf16, #tpu.memory_space<vmem>>, vector<128x128xbf16>
    %c0_7 = arith.constant 0 : index
    %c128_8 = arith.constant 128 : index
    %11 = vector.load %arg3[%c0_7, %c128_8] : memref<1x768xf32, #tpu.memory_space<vmem>>, vector<1x128xf32>
    %cst_9 = arith.constant dense<0.000000e+00> : vector<8x128xf32>
    %12 = tpu.matmul %9, %10, %cst_9 {dimension_numbers = #tpu.dot_dimension_numbers<[1], [0], [0], [1], [0, 0, 1, 1], [], []>} : vector<8x128xbf16>, vector<128x128xbf16>, vector<8x128xf32> -> vector<8x128xf32>
    %13 = vector.broadcast %11 : vector<1x128xf32> to vector<8x128xf32>
    %14 = arith.addf %12, %13 : vector<8x128xf32>
    %cst_10 = arith.constant 0.000000e+00 : f32
    %15 = vector.broadcast %cst_10 : f32 to vector<8x128xf32>
    %16 = arith.maximumf %14, %15 : vector<8x128xf32>
    %17 = arith.truncf %16 : vector<8x128xf32> to vector<8x128xbf16>
    %c0_11 = arith.constant 0 : index
    %c256 = arith.constant 256 : index
    %18 = vector.load %arg2[%c0_11, %c256] : memref<128x768xbf16, #tpu.memory_space<vmem>>, vector<128x128xbf16>
    %c0_12 = arith.constant 0 : index
    %c256_13 = arith.constant 256 : index
    %19 = vector.load %arg3[%c0_12, %c256_13] : memref<1x768xf32, #tpu.memory_space<vmem>>, vector<1x128xf32>
    %cst_14 = arith.constant dense<0.000000e+00> : vector<8x128xf32>
    %20 = tpu.matmul %17, %18, %cst_14 {dimension_numbers = #tpu.dot_dimension_numbers<[1], [0], [0], [1], [0, 0, 1, 1], [], []>} : vector<8x128xbf16>, vector<128x128xbf16>, vector<8x128xf32> -> vector<8x128xf32>
    %21 = vector.broadcast %19 : vector<1x128xf32> to vector<8x128xf32>
    %22 = arith.addf %20, %21 : vector<8x128xf32>
    %cst_15 = arith.constant 0.000000e+00 : f32
    %23 = vector.broadcast %cst_15 : f32 to vector<8x128xf32>
    %24 = arith.maximumf %22, %23 : vector<8x128xf32>
    %25 = arith.truncf %24 : vector<8x128xf32> to vector<8x128xbf16>
    %c0_16 = arith.constant 0 : index
    %c384 = arith.constant 384 : index
    %26 = vector.load %arg2[%c0_16, %c384] : memref<128x768xbf16, #tpu.memory_space<vmem>>, vector<128x128xbf16>
    %c0_17 = arith.constant 0 : index
    %c384_18 = arith.constant 384 : index
    %27 = vector.load %arg3[%c0_17, %c384_18] : memref<1x768xf32, #tpu.memory_space<vmem>>, vector<1x128xf32>
    %cst_19 = arith.constant dense<0.000000e+00> : vector<8x128xf32>
    %28 = tpu.matmul %25, %26, %cst_19 {dimension_numbers = #tpu.dot_dimension_numbers<[1], [0], [0], [1], [0, 0, 1, 1], [], []>} : vector<8x128xbf16>, vector<128x128xbf16>, vector<8x128xf32> -> vector<8x128xf32>
    %29 = vector.broadcast %27 : vector<1x128xf32> to vector<8x128xf32>
    %30 = arith.addf %28, %29 : vector<8x128xf32>
    %cst_20 = arith.constant 0.000000e+00 : f32
    %31 = vector.broadcast %cst_20 : f32 to vector<8x128xf32>
    %32 = arith.maximumf %30, %31 : vector<8x128xf32>
    %33 = arith.truncf %32 : vector<8x128xf32> to vector<8x128xbf16>
    %c0_21 = arith.constant 0 : index
    %c512 = arith.constant 512 : index
    %34 = vector.load %arg2[%c0_21, %c512] : memref<128x768xbf16, #tpu.memory_space<vmem>>, vector<128x128xbf16>
    %c0_22 = arith.constant 0 : index
    %c512_23 = arith.constant 512 : index
    %35 = vector.load %arg3[%c0_22, %c512_23] : memref<1x768xf32, #tpu.memory_space<vmem>>, vector<1x128xf32>
    %cst_24 = arith.constant dense<0.000000e+00> : vector<8x128xf32>
    %36 = tpu.matmul %33, %34, %cst_24 {dimension_numbers = #tpu.dot_dimension_numbers<[1], [0], [0], [1], [0, 0, 1, 1], [], []>} : vector<8x128xbf16>, vector<128x128xbf16>, vector<8x128xf32> -> vector<8x128xf32>
    %37 = vector.broadcast %35 : vector<1x128xf32> to vector<8x128xf32>
    %38 = arith.addf %36, %37 : vector<8x128xf32>
    %cst_25 = arith.constant 0.000000e+00 : f32
    %39 = vector.broadcast %cst_25 : f32 to vector<8x128xf32>
    %40 = arith.maximumf %38, %39 : vector<8x128xf32>
    %41 = arith.truncf %40 : vector<8x128xf32> to vector<8x128xbf16>
    %c0_26 = arith.constant 0 : index
    %c640 = arith.constant 640 : index
    %42 = vector.load %arg2[%c0_26, %c640] : memref<128x768xbf16, #tpu.memory_space<vmem>>, vector<128x128xbf16>
    %c0_27 = arith.constant 0 : index
    %c640_28 = arith.constant 640 : index
    %43 = vector.load %arg3[%c0_27, %c640_28] : memref<1x768xf32, #tpu.memory_space<vmem>>, vector<1x128xf32>
    %cst_29 = arith.constant dense<0.000000e+00> : vector<8x128xf32>
    %44 = tpu.matmul %41, %42, %cst_29 {dimension_numbers = #tpu.dot_dimension_numbers<[1], [0], [0], [1], [0, 0, 1, 1], [], []>} : vector<8x128xbf16>, vector<128x128xbf16>, vector<8x128xf32> -> vector<8x128xf32>
    %45 = vector.broadcast %43 : vector<1x128xf32> to vector<8x128xf32>
    %46 = arith.addf %44, %45 : vector<8x128xf32>
    %47 = vector.extract_strided_slice %46 {offsets = [0, 0], sizes = [8, 8], strides = [1, 1]} : vector<8x128xf32> to vector<8x8xf32>
    %c0_30 = arith.constant 0 : index
    %c0_31 = arith.constant 0 : index
    %48 = vector.load %arg4[%c0_30, %c0_31] : memref<8x8xf32, #tpu.memory_space<vmem>>, vector<8x8xf32>
    tpu.vector_store %arg4[%c0_30, %c0_31], %47 {strides = array<i32>} : memref<8x8xf32, #tpu.memory_space<vmem>>, vector<8x8xf32>,
    return
  }
  func.func @transform_0(%arg0: i32) -> (i32, i32) {
    %c0_i32 = arith.constant 0 : i32
    %c0_i32_0 = arith.constant 0 : i32
    return %arg0, %c0_i32 : i32, i32
  }
  func.func @transform_1(%arg0: i32) -> (i32, i32) {
    %c0_i32 = arith.constant 0 : i32
    %c0_i32_0 = arith.constant 0 : i32
    %c0_i32_1 = arith.constant 0 : i32
    return %c0_i32, %c0_i32_0 : i32, i32
  }
  func.func @transform_2(%arg0: i32) -> (i32, i32) {
    %c0_i32 = arith.constant 0 : i32
    %c0_i32_0 = arith.constant 0 : i32
    %c0_i32_1 = arith.constant 0 : i32
    return %c0_i32, %c0_i32_0 : i32, i32
  }
  func.func @transform_3(%arg0: i32) -> (i32, i32) {
    %c0_i32 = arith.constant 0 : i32
    %c0_i32_0 = arith.constant 0 : i32
    return %arg0, %c0_i32 : i32, i32
  }
}

</mosaic_0001>

<llo_original>
// kernel: dqn_forward.1
$region0: #{dqn_forward.1}
  #allocation0 [shape = 'u32[]', space=smem, size = 0x4, offset = 0x4, fixed_abs, tag = 'smem constant byte address 0x4 - core index']
  #allocation1 [shape = 'u32[144,128]{1,0:T(1,128)}', space=vmem, size = 0x12000, scoped, tag = 'internal scratch']
  %s0 = inlined_call_operand.hbm [shape: f32[2,8], index: 0, kind: input, shape index: {}]
  %s1 = inlined_call_operand.hbm [shape: bf16[128,768], index: 1, kind: input, shape index: {}]
  %s2 = inlined_call_operand.hbm [shape: f32[1,768], index: 2, kind: input, shape index: {}]
  %s3 = inlined_call_operand.hbm [shape: f32[2,8], index: 3, kind: output, shape index: {}]
  %s4 = sld [smem:[#allocation0]]
  $region34: #{dqn_forward.1} parent=0
    _
  %s6 = ssub.s32 1, %s4
  %s7 = scalar_select 0, %s6, %s4
  $region1: #{dqn_forward.1} parent=0
    #allocation2 [shape = 'u8[4096]{0}', space=vmem, size = 0x1000, scoped, tag = 'input window, operand 0, single buffered']
    #allocation3 [shape = 's32[1]{0}', space=sflag, size = 0x4, scoped, tag = 'scoped memory for dqn_forward.1']
    #allocation4 [shape = 's32[1]{0}', space=sflag, size = 0x4, scoped, tag = 'scoped memory for dqn_forward.1']
    #allocation5 [shape = 'u8[196608]{0}', space=vmem, size = 0x30000, scoped, tag = 'input window, operand 1, single buffered']
    #allocation6 [shape = 's32[1]{0}', space=sflag, size = 0x4, scoped, tag = 'scoped memory for dqn_forward.1']
    #allocation7 [shape = 'u8[3072]{0}', space=vmem, size = 0xc00, scoped, tag = 'input window, operand 2, single buffered']
    #allocation8 [shape = 'u8[4096]{0}', space=vmem, size = 0x1000, scoped, tag = 'output window, operand 0, single buffered']
    %8 = vsyncpa [#allocation3], 0
    %9 = vsyncpa [#allocation6], 0
    %10 = vsyncpa [#allocation4], 0
    // Predicated region
    $region2: #{dqn_forward.1} parent=1 // pred_check
      _
    $region3: #{dqn_forward.1} parent=1 // pred_check_branch
      %12 = sbr.rel (0) target = $region5
    $region4: #{dqn_forward.1} parent=1 // pred_region
      %s14 = ssub.s32 128, 32
      %15 = vsyncadd [#allocation3], %s14
      %s16 = sshll.u32 [#allocation2], 4
      %s17 = int_to_ptr.vmem [resolvable:$true] %s16
      %22 = dma.hbm_to_vmem [thread:$0]  %s0, 32, %s17, [#allocation3], 32, 32, 2
    $region5: #{dqn_forward.1} parent=1 // pred_fallthru
      _
    // Predicated region
    $region6: #{dqn_forward.1} parent=1 // pred_check
      _
    $region7: #{dqn_forward.1} parent=1 // pred_check_branch
      %24 = sbr.rel (0) target = $region9
    $region8: #{dqn_forward.1} parent=1 // pred_region
      %s26 = ssub.s32 6144, 6144
      %27 = vsyncadd [#allocation6], %s26
      %s28 = sshll.u32 [#allocation5], 4
      %s29 = int_to_ptr.vmem [resolvable:$true] %s28
      %34 = dma.hbm_to_vmem [thread:$0]  %s1, 6144, %s29, [#allocation6], 384, 384, 24
    $region9: #{dqn_forward.1} parent=1 // pred_fallthru
      _
    // Predicated region
    $region10: #{dqn_forward.1} parent=1 // pred_check
      _
    $region11: #{dqn_forward.1} parent=1 // pred_check_branch
      %36 = sbr.rel (0) target = $region13
    $region12: #{dqn_forward.1} parent=1 // pred_region
      %s38 = ssub.s32 96, 96
      %39 = vsyncadd [#allocation6], %s38
      %s41 = sshll.u32 [#allocation7], 4
      %s42 = int_to_ptr.vmem [resolvable:$true] %s41
      %44 = dma.hbm_to_vmem [thread:$0]  %s2, 96, %s42, [#allocation6]
    $region13: #{dqn_forward.1} parent=1 // pred_fallthru
      _
    // Predicated region
    $region14: #{dqn_forward.1} parent=1 // pred_check
      _
    $region15: #{dqn_forward.1} parent=1 // pred_check_branch
      %46 = sbr.rel (0) target = $region17
    $region16: #{dqn_forward.1} parent=1 // pred_region
      %47 = dma.done [#allocation3], 128
    $region17: #{dqn_forward.1} parent=1 // pred_fallthru
      _
    // Predicated region
    $region18: #{dqn_forward.1} parent=1 // pred_check
      _
    $region19: #{dqn_forward.1} parent=1 // pred_check_branch
      %49 = sbr.rel (0) target = $region21
    $region20: #{dqn_forward.1} parent=1 // pred_region
      %50 = dma.done [#allocation6], 6144
    $region21: #{dqn_forward.1} parent=1 // pred_fallthru
      _
    // Predicated region
    $region22: #{dqn_forward.1} parent=1 // pred_check
      _
    $region23: #{dqn_forward.1} parent=1 // pred_check_branch
      %52 = sbr.rel (0) target = $region25
    $region24: #{dqn_forward.1} parent=1 // pred_region
      %53 = dma.done [#allocation6], 96
    $region25: #{dqn_forward.1} parent=1 // pred_fallthru
      _
    %v55 = vld [vmem:[#allocation2] sm:$0xff]
    %v56 = vpack.c.bf16 %v55, %v55
    %v57 = vld [vmem:[#allocation5] sm:$0xf]
    %v58 = vld [vmem:[#allocation7] sm:$0x1]
    %v60 = vlaneseq
    %v61 = vshrl.u32 %v60, 7
    %v62 = vsub.s32 0, %v61
    %v63 = vrot.slane %v58, %v62
    %vm65 = vcmask 64512
    %v67 = vsel %vm65, %v56, 0
    %vm69 = vcmask 1043456
    %v71 = vsel %vm69, %v57, 0
    %73 = vmatprep.subr.bf16.mxu0 0
    %74 = vmatpush1.bf16.msra.mxu0 0
    %75 = vmatprep.subr.bf16.mxu0 0
    %76 = vmatpush1.bf16.msra.mxu0 0
    %77 = vmatprep.subr.bf16.mxu0 0
    %78 = vmatpush1.bf16.msra.mxu0 0
    %79 = vmatprep.subr.bf16.mxu0 0
    %80 = vmatpush1.bf16.msra.mxu0 0
    %81 = vmatprep.subr.bf16.mxu0 0
    %82 = vmatpush1.bf16.msra.mxu0 0
    %83 = vmatprep.subr.bf16.mxu0 0
    %84 = vmatpush1.bf16.msra.mxu0 0
    %85 = vmatprep.subr.bf16.mxu0 0
    %86 = vmatpush1.bf16.msra.mxu0 0
    %87 = vmatprep.subr.bf16.mxu0 0
    %88 = vmatpush1.bf16.msra.mxu0 %v71
    %89 = vmatprep.subr.bf16.mxu0 0
    %90 = vmatpush2.bf16.msra.mxu0 0
    %91 = vmatprep.subr.bf16.mxu0 0
    %92 = vmatpush2.bf16.msra.mxu0 0
    %93 = vmatprep.subr.bf16.mxu0 0
    %94 = vmatpush2.bf16.msra.mxu0 0
    %95 = vmatprep.subr.bf16.mxu0 0
    %96 = vmatpush2.bf16.msra.mxu0 0
    %97 = vmatprep.subr.bf16.mxu0 0
    %98 = vmatpush2.bf16.msra.mxu0 0
    %99 = vmatprep.subr.bf16.mxu0 0
    %100 = vmatpush2.bf16.msra.mxu0 0
    %101 = vmatprep.subr.bf16.mxu0 0
    %102 = vmatpush2.bf16.msra.mxu0 0
    %103 = vmatprep.subr.bf16.mxu0 0
    %104 = vmatpush2.bf16.msra.mxu0 0
    %105 = vmatprep.mubr.bf16.mxu0 0
    %106 = vmatmul.mubr.bf16.gmra.mxu0 %v67
    %v107 = vpop.f32.mrf.mxu0
    %v108 = vadd.f32 %v63, %v107
    %v109 = vpop.f32.mrf.mxu0
    %v110 = vpop.f32.mrf.mxu0
    %v111 = vpop.f32.mrf.mxu0
    %112 = vdwg.mxu0
    %v113 = vmax.f32 %v108, 0.0
    %v114 = vpack.c.bf16 %v113, %v113
    %v115 = vld [vmem:[#allocation5 + $0x4] sm:$0xf]
    %v116 = vld [vmem:[#allocation5 + $0x1c] sm:$0xf]
    %v117 = vld [vmem:[#allocation5 + $0x34] sm:$0xf]
    %v118 = vld [vmem:[#allocation5 + $0x4c] sm:$0xf]
    %v119 = vld [vmem:[#allocation5 + $0x64] sm:$0xf]
    %v120 = vld [vmem:[#allocation5 + $0x7c] sm:$0xf]
    %v121 = vld [vmem:[#allocation5 + $0x94] sm:$0xf]
    %v122 = vld [vmem:[#allocation5 + $0xac] sm:$0xf]
    %v123 = vld [vmem:[#allocation5 + $0xc4] sm:$0xf]
    %v124 = vld [vmem:[#allocation5 + $0xdc] sm:$0xf]
    %v125 = vld [vmem:[#allocation5 + $0xf4] sm:$0xf]
    %v126 = vld [vmem:[#allocation5 + $0x10c] sm:$0xf]
    %v127 = vld [vmem:[#allocation5 + $0x124] sm:$0xf]
    %v128 = vld [vmem:[#allocation5 + $0x13c] sm:$0xf]
    %v129 = vld [vmem:[#allocation5 + $0x154] sm:$0xf]
    %v130 = vld [vmem:[#allocation5 + $0x16c] sm:$0xf]
    %v131 = vld [vmem:[#allocation7 + $0x1] sm:$0x1]
    %v133 = vlaneseq
    %v134 = vshrl.u32 %v133, 7
    %v135 = vsub.s32 0, %v134
    %v136 = vrot.slane %v131, %v135
    %v154 = vunpack.c.l.b16 %v115
    %v155 = vunpack.c.l.b16 %v116
    %v156 = vunpack.c.l.b16 %v117
    %v157 = vunpack.c.l.b16 %v118
    %v158 = vunpack.c.l.b16 %v119
    %v159 = vunpack.c.l.b16 %v120
    %v160 = vunpack.c.l.b16 %v121
    %v161 = vunpack.c.l.b16 %v122
    %v162 = vunpack.c.l.b16 %v123
    %v163 = vunpack.c.l.b16 %v124
    %v164 = vunpack.c.l.b16 %v125
    %v165 = vunpack.c.l.b16 %v126
    %v166 = vunpack.c.l.b16 %v127
    %v167 = vunpack.c.l.b16 %v128
    %v168 = vunpack.c.l.b16 %v129
    %v169 = vunpack.c.l.b16 %v130
    %v170 = vpack.c.b16 %v155, %v154
    %v171 = vpack.c.b16 %v157, %v156
    %v172 = vpack.c.b16 %v159, %v158
    %v173 = vpack.c.b16 %v161, %v160
    %v174 = vpack.c.b16 %v163, %v162
    %v175 = vpack.c.b16 %v165, %v164
    %v176 = vpack.c.b16 %v167, %v166
    %v177 = vpack.c.b16 %v169, %v168
    %186 = vmatprep.subr.bf16.mxu0 0
    %187 = vmatpush1.bf16.msra.mxu0 %v177
    %188 = vmatprep.subr.bf16.mxu0 0
    %189 = vmatpush1.bf16.msra.mxu0 %v176
    %190 = vmatprep.subr.bf16.mxu0 0
    %191 = vmatpush1.bf16.msra.mxu0 %v175
    %192 = vmatprep.subr.bf16.mxu0 0
    %193 = vmatpush1.bf16.msra.mxu0 %v174
    %194 = vmatprep.subr.bf16.mxu0 0
    %195 = vmatpush1.bf16.msra.mxu0 %v173
    %196 = vmatprep.subr.bf16.mxu0 0
    %197 = vmatpush1.bf16.msra.mxu0 %v172
    %198 = vmatprep.subr.bf16.mxu0 0
    %199 = vmatpush1.bf16.msra.mxu0 %v171
    %200 = vmatprep.subr.bf16.mxu0 0
    %201 = vmatpush1.bf16.msra.mxu0 %v170
    %202 = vmatprep.subr.bf16.mxu0 0
    %203 = vmatpush2.bf16.msra.mxu0 0
    %204 = vmatprep.subr.bf16.mxu0 0
    %205 = vmatpush2.bf16.msra.mxu0 0
    %206 = vmatprep.subr.bf16.mxu0 0
    %207 = vmatpush2.bf16.msra.mxu0 0
    %208 = vmatprep.subr.bf16.mxu0 0
    %209 = vmatpush2.bf16.msra.mxu0 0
    %210 = vmatprep.subr.bf16.mxu0 0
    %211 = vmatpush2.bf16.msra.mxu0 0
    %212 = vmatprep.subr.bf16.mxu0 0
    %213 = vmatpush2.bf16.msra.mxu0 0
    %214 = vmatprep.subr.bf16.mxu0 0
    %215 = vmatpush2.bf16.msra.mxu0 0
    %216 = vmatprep.subr.bf16.mxu0 0
    %217 = vmatpush2.bf16.msra.mxu0 0
    %218 = vmatprep.mubr.bf16.mxu0 0
    %219 = vmatmul.mubr.bf16.gmra.mxu0 %v114
    %v220 = vpop.f32.mrf.mxu0
    %v221 = vadd.f32 %v136, %v220
    %v222 = vpop.f32.mrf.mxu0
    %v223 = vpop.f32.mrf.mxu0
    %v224 = vpop.f32.mrf.mxu0
    %225 = vdwg.mxu0
    %v226 = vmax.f32 %v221, 0.0
    %v227 = vpack.c.bf16 %v226, %v226
    %v228 = vld [vmem:[#allocation5 + $0x8] sm:$0xf]
    %v229 = vld [vmem:[#allocation5 + $0x20] sm:$0xf]
    %v230 = vld [vmem:[#allocation5 + $0x38] sm:$0xf]
    %v231 = vld [vmem:[#allocation5 + $0x50] sm:$0xf]
    %v232 = vld [vmem:[#allocation5 + $0x68] sm:$0xf]
    %v233 = vld [vmem:[#allocation5 + $0x80] sm:$0xf]
    %v234 = vld [vmem:[#allocation5 + $0x98] sm:$0xf]
    %v235 = vld [vmem:[#allocation5 + $0xb0] sm:$0xf]
    %v236 = vld [vmem:[#allocation5 + $0xc8] sm:$0xf]
    %v237 = vld [vmem:[#allocation5 + $0xe0] sm:$0xf]
    %v238 = vld [vmem:[#allocation5 + $0xf8] sm:$0xf]
    %v239 = vld [vmem:[#allocation5 + $0x110] sm:$0xf]
    %v240 = vld [vmem:[#allocation5 + $0x128] sm:$0xf]
    %v241 = vld [vmem:[#allocation5 + $0x140] sm:$0xf]
    %v242 = vld [vmem:[#allocation5 + $0x158] sm:$0xf]
    %v243 = vld [vmem:[#allocation5 + $0x170] sm:$0xf]
    %v244 = vld [vmem:[#allocation7 + $0x2] sm:$0x1]
    %v246 = vlaneseq
    %v247 = vshrl.u32 %v246, 7
    %v248 = vsub.s32 0, %v247
    %v249 = vrot.slane %v244, %v248
    %v267 = vunpack.c.l.b16 %v228
    %v268 = vunpack.c.l.b16 %v229
    %v269 = vunpack.c.l.b16 %v230
    %v270 = vunpack.c.l.b16 %v231
    %v271 = vunpack.c.l.b16 %v232
    %v272 = vunpack.c.l.b16 %v233
    %v273 = vunpack.c.l.b16 %v234
    %v274 = vunpack.c.l.b16 %v235
    %v275 = vunpack.c.l.b16 %v236
    %v276 = vunpack.c.l.b16 %v237
    %v277 = vunpack.c.l.b16 %v238
    %v278 = vunpack.c.l.b16 %v239
    %v279 = vunpack.c.l.b16 %v240
    %v280 = vunpack.c.l.b16 %v241
    %v281 = vunpack.c.l.b16 %v242
    %v282 = vunpack.c.l.b16 %v243
    %v283 = vpack.c.b16 %v268, %v267
    %v284 = vpack.c.b16 %v270, %v269
    %v285 = vpack.c.b16 %v272, %v271
    %v286 = vpack.c.b16 %v274, %v273
    %v287 = vpack.c.b16 %v276, %v275
    %v288 = vpack.c.b16 %v278, %v277
    %v289 = vpack.c.b16 %v280, %v279
    %v290 = vpack.c.b16 %v282, %v281
    %299 = vmatprep.subr.bf16.mxu0 0
    %300 = vmatpush1.bf16.msra.mxu0 %v290
    %301 = vmatprep.subr.bf16.mxu0 0
    %302 = vmatpush1.bf16.msra.mxu0 %v289
    %303 = vmatprep.subr.bf16.mxu0 0
    %304 = vmatpush1.bf16.msra.mxu0 %v288
    %305 = vmatprep.subr.bf16.mxu0 0
    %306 = vmatpush1.bf16.msra.mxu0 %v287
    %307 = vmatprep.subr.bf16.mxu0 0
    %308 = vmatpush1.bf16.msra.mxu0 %v286
    %309 = vmatprep.subr.bf16.mxu0 0
    %310 = vmatpush1.bf16.msra.mxu0 %v285
    %311 = vmatprep.subr.bf16.mxu0 0
    %312 = vmatpush1.bf16.msra.mxu0 %v284
    %313 = vmatprep.subr.bf16.mxu0 0
    %314 = vmatpush1.bf16.msra.mxu0 %v283
    %315 = vmatprep.subr.bf16.mxu0 0
    %316 = vmatpush2.bf16.msra.mxu0 0
    %317 = vmatprep.subr.bf16.mxu0 0
    %318 = vmatpush2.bf16.msra.mxu0 0
    %319 = vmatprep.subr.bf16.mxu0 0
    %320 = vmatpush2.bf16.msra.mxu0 0
    %321 = vmatprep.subr.bf16.mxu0 0
    %322 = vmatpush2.bf16.msra.mxu0 0
    %323 = vmatprep.subr.bf16.mxu0 0
    %324 = vmatpush2.bf16.msra.mxu0 0
    %325 = vmatprep.subr.bf16.mxu0 0
    %326 = vmatpush2.bf16.msra.mxu0 0
    %327 = vmatprep.subr.bf16.mxu0 0
    %328 = vmatpush2.bf16.msra.mxu0 0
    %329 = vmatprep.subr.bf16.mxu0 0
    %330 = vmatpush2.bf16.msra.mxu0 0
    %331 = vmatprep.mubr.bf16.mxu0 0
    %332 = vmatmul.mubr.bf16.gmra.mxu0 %v227
    %v333 = vpop.f32.mrf.mxu0
    %v334 = vadd.f32 %v249, %v333
    %v335 = vpop.f32.mrf.mxu0
    %v336 = vpop.f32.mrf.mxu0
    %v337 = vpop.f32.mrf.mxu0
    %338 = vdwg.mxu0
    %v339 = vmax.f32 %v334, 0.0
    %v340 = vpack.c.bf16 %v339, %v339
    %v341 = vld [vmem:[#allocation5 + $0xc] sm:$0xf]
    %v342 = vld [vmem:[#allocation5 + $0x24] sm:$0xf]
    %v343 = vld [vmem:[#allocation5 + $0x3c] sm:$0xf]
    %v344 = vld [vmem:[#allocation5 + $0x54] sm:$0xf]
    %v345 = vld [vmem:[#allocation5 + $0x6c] sm:$0xf]
    %v346 = vld [vmem:[#allocation5 + $0x84] sm:$0xf]
    %v347 = vld [vmem:[#allocation5 + $0x9c] sm:$0xf]
    %v348 = vld [vmem:[#allocation5 + $0xb4] sm:$0xf]
    %v349 = vld [vmem:[#allocation5 + $0xcc] sm:$0xf]
    %v350 = vld [vmem:[#allocation5 + $0xe4] sm:$0xf]
    %v351 = vld [vmem:[#allocation5 + $0xfc] sm:$0xf]
    %v352 = vld [vmem:[#allocation5 + $0x114] sm:$0xf]
    %v353 = vld [vmem:[#allocation5 + $0x12c] sm:$0xf]
    %v354 = vld [vmem:[#allocation5 + $0x144] sm:$0xf]
    %v355 = vld [vmem:[#allocation5 + $0x15c] sm:$0xf]
    %v356 = vld [vmem:[#allocation5 + $0x174] sm:$0xf]
    %v357 = vld [vmem:[#allocation7 + $0x3] sm:$0x1]
    %v359 = vlaneseq
    %v360 = vshrl.u32 %v359, 7
    %v361 = vsub.s32 0, %v360
    %v362 = vrot.slane %v357, %v361
    %v380 = vunpack.c.l.b16 %v341
    %v381 = vunpack.c.l.b16 %v342
    %v382 = vunpack.c.l.b16 %v343
    %v383 = vunpack.c.l.b16 %v344
    %v384 = vunpack.c.l.b16 %v345
    %v385 = vunpack.c.l.b16 %v346
    %v386 = vunpack.c.l.b16 %v347
    %v387 = vunpack.c.l.b16 %v348
    %v388 = vunpack.c.l.b16 %v349
    %v389 = vunpack.c.l.b16 %v350
    %v390 = vunpack.c.l.b16 %v351
    %v391 = vunpack.c.l.b16 %v352
    %v392 = vunpack.c.l.b16 %v353
    %v393 = vunpack.c.l.b16 %v354
    %v394 = vunpack.c.l.b16 %v355
    %v395 = vunpack.c.l.b16 %v356
    %v396 = vpack.c.b16 %v381, %v380
    %v397 = vpack.c.b16 %v383, %v382
    %v398 = vpack.c.b16 %v385, %v384
    %v399 = vpack.c.b16 %v387, %v386
    %v400 = vpack.c.b16 %v389, %v388
    %v401 = vpack.c.b16 %v391, %v390
    %v402 = vpack.c.b16 %v393, %v392
    %v403 = vpack.c.b16 %v395, %v394
    %412 = vmatprep.subr.bf16.mxu0 0
    %413 = vmatpush1.bf16.msra.mxu0 %v403
    %414 = vmatprep.subr.bf16.mxu0 0
    %415 = vmatpush1.bf16.msra.mxu0 %v402
    %416 = vmatprep.subr.bf16.mxu0 0
    %417 = vmatpush1.bf16.msra.mxu0 %v401
    %418 = vmatprep.subr.bf16.mxu0 0
    %419 = vmatpush1.bf16.msra.mxu0 %v400
    %420 = vmatprep.subr.bf16.mxu0 0
    %421 = vmatpush1.bf16.msra.mxu0 %v399
    %422 = vmatprep.subr.bf16.mxu0 0
    %423 = vmatpush1.bf16.msra.mxu0 %v398
    %424 = vmatprep.subr.bf16.mxu0 0
    %425 = vmatpush1.bf16.msra.mxu0 %v397
    %426 = vmatprep.subr.bf16.mxu0 0
    %427 = vmatpush1.bf16.msra.mxu0 %v396
    %428 = vmatprep.subr.bf16.mxu0 0
    %429 = vmatpush2.bf16.msra.mxu0 0
    %430 = vmatprep.subr.bf16.mxu0 0
    %431 = vmatpush2.bf16.msra.mxu0 0
    %432 = vmatprep.subr.bf16.mxu0 0
    %433 = vmatpush2.bf16.msra.mxu0 0
    %434 = vmatprep.subr.bf16.mxu0 0
    %435 = vmatpush2.bf16.msra.mxu0 0
    %436 = vmatprep.subr.bf16.mxu0 0
    %437 = vmatpush2.bf16.msra.mxu0 0
    %438 = vmatprep.subr.bf16.mxu0 0
    %439 = vmatpush2.bf16.msra.mxu0 0
    %440 = vmatprep.subr.bf16.mxu0 0
    %441 = vmatpush2.bf16.msra.mxu0 0
    %442 = vmatprep.subr.bf16.mxu0 0
    %443 = vmatpush2.bf16.msra.mxu0 0
    %444 = vmatprep.mubr.bf16.mxu0 0
    %445 = vmatmul.mubr.bf16.gmra.mxu0 %v340
    %v446 = vpop.f32.mrf.mxu0
    %v447 = vadd.f32 %v362, %v446
    %v448 = vpop.f32.mrf.mxu0
    %v449 = vpop.f32.mrf.mxu0
    %v450 = vpop.f32.mrf.mxu0
    %451 = vdwg.mxu0
    %v452 = vmax.f32 %v447, 0.0
    %v453 = vpack.c.bf16 %v452, %v452
    %v454 = vld [vmem:[#allocation5 + $0x10] sm:$0xf]
    %v455 = vld [vmem:[#allocation5 + $0x28] sm:$0xf]
    %v456 = vld [vmem:[#allocation5 + $0x40] sm:$0xf]
    %v457 = vld [vmem:[#allocation5 + $0x58] sm:$0xf]
    %v458 = vld [vmem:[#allocation5 + $0x70] sm:$0xf]
    %v459 = vld [vmem:[#allocation5 + $0x88] sm:$0xf]
    %v460 = vld [vmem:[#allocation5 + $0xa0] sm:$0xf]
    %v461 = vld [vmem:[#allocation5 + $0xb8] sm:$0xf]
    %v462 = vld [vmem:[#allocation5 + $0xd0] sm:$0xf]
    %v463 = vld [vmem:[#allocation5 + $0xe8] sm:$0xf]
    %v464 = vld [vmem:[#allocation5 + $0x100] sm:$0xf]
    %v465 = vld [vmem:[#allocation5 + $0x118] sm:$0xf]
    %v466 = vld [vmem:[#allocation5 + $0x130] sm:$0xf]
    %v467 = vld [vmem:[#allocation5 + $0x148] sm:$0xf]
    %v468 = vld [vmem:[#allocation5 + $0x160] sm:$0xf]
    %v469 = vld [vmem:[#allocation5 + $0x178] sm:$0xf]
    %v470 = vld [vmem:[#allocation7 + $0x4] sm:$0x1]
    %v472 = vlaneseq
    %v473 = vshrl.u32 %v472, 7
    %v474 = vsub.s32 0, %v473
    %v475 = vrot.slane %v470, %v474
    %v493 = vunpack.c.l.b16 %v454
    %v494 = vunpack.c.l.b16 %v455
    %v495 = vunpack.c.l.b16 %v456
    %v496 = vunpack.c.l.b16 %v457
    %v497 = vunpack.c.l.b16 %v458
    %v498 = vunpack.c.l.b16 %v459
    %v499 = vunpack.c.l.b16 %v460
    %v500 = vunpack.c.l.b16 %v461
    %v501 = vunpack.c.l.b16 %v462
    %v502 = vunpack.c.l.b16 %v463
    %v503 = vunpack.c.l.b16 %v464
    %v504 = vunpack.c.l.b16 %v465
    %v505 = vunpack.c.l.b16 %v466
    %v506 = vunpack.c.l.b16 %v467
    %v507 = vunpack.c.l.b16 %v468
    %v508 = vunpack.c.l.b16 %v469
    %v509 = vpack.c.b16 %v494, %v493
    %v510 = vpack.c.b16 %v496, %v495
    %v511 = vpack.c.b16 %v498, %v497
    %v512 = vpack.c.b16 %v500, %v499
    %v513 = vpack.c.b16 %v502, %v501
    %v514 = vpack.c.b16 %v504, %v503
    %v515 = vpack.c.b16 %v506, %v505
    %v516 = vpack.c.b16 %v508, %v507
    %525 = vmatprep.subr.bf16.mxu0 0
    %526 = vmatpush1.bf16.msra.mxu0 %v516
    %527 = vmatprep.subr.bf16.mxu0 0
    %528 = vmatpush1.bf16.msra.mxu0 %v515
    %529 = vmatprep.subr.bf16.mxu0 0
    %530 = vmatpush1.bf16.msra.mxu0 %v514
    %531 = vmatprep.subr.bf16.mxu0 0
    %532 = vmatpush1.bf16.msra.mxu0 %v513
    %533 = vmatprep.subr.bf16.mxu0 0
    %534 = vmatpush1.bf16.msra.mxu0 %v512
    %535 = vmatprep.subr.bf16.mxu0 0
    %536 = vmatpush1.bf16.msra.mxu0 %v511
    %537 = vmatprep.subr.bf16.mxu0 0
    %538 = vmatpush1.bf16.msra.mxu0 %v510
    %539 = vmatprep.subr.bf16.mxu0 0
    %540 = vmatpush1.bf16.msra.mxu0 %v509
    %541 = vmatprep.subr.bf16.mxu0 0
    %542 = vmatpush2.bf16.msra.mxu0 0
    %543 = vmatprep.subr.bf16.mxu0 0
    %544 = vmatpush2.bf16.msra.mxu0 0
    %545 = vmatprep.subr.bf16.mxu0 0
    %546 = vmatpush2.bf16.msra.mxu0 0
    %547 = vmatprep.subr.bf16.mxu0 0
    %548 = vmatpush2.bf16.msra.mxu0 0
    %549 = vmatprep.subr.bf16.mxu0 0
    %550 = vmatpush2.bf16.msra.mxu0 0
    %551 = vmatprep.subr.bf16.mxu0 0
    %552 = vmatpush2.bf16.msra.mxu0 0
    %553 = vmatprep.subr.bf16.mxu0 0
    %554 = vmatpush2.bf16.msra.mxu0 0
    %555 = vmatprep.subr.bf16.mxu0 0
    %556 = vmatpush2.bf16.msra.mxu0 0
    %557 = vmatprep.mubr.bf16.mxu0 0
    %558 = vmatmul.mubr.bf16.gmra.mxu0 %v453
    %v559 = vpop.f32.mrf.mxu0
    %v560 = vadd.f32 %v475, %v559
    %v561 = vpop.f32.mrf.mxu0
    %v562 = vpop.f32.mrf.mxu0
    %v563 = vpop.f32.mrf.mxu0
    %564 = vdwg.mxu0
    %v565 = vmax.f32 %v560, 0.0
    %v566 = vpack.c.bf16 %v565, %v565
    %v567 = vld [vmem:[#allocation5 + $0x14] sm:$0xf]
    %v568 = vld [vmem:[#allocation5 + $0x2c] sm:$0xf]
    %v569 = vld [vmem:[#allocation5 + $0x44] sm:$0xf]
    %v570 = vld [vmem:[#allocation5 + $0x5c] sm:$0xf]
    %v571 = vld [vmem:[#allocation5 + $0x74] sm:$0xf]
    %v572 = vld [vmem:[#allocation5 + $0x8c] sm:$0xf]
    %v573 = vld [vmem:[#allocation5 + $0xa4] sm:$0xf]
    %v574 = vld [vmem:[#allocation5 + $0xbc] sm:$0xf]
    %v575 = vld [vmem:[#allocation5 + $0xd4] sm:$0xf]
    %v576 = vld [vmem:[#allocation5 + $0xec] sm:$0xf]
    %v577 = vld [vmem:[#allocation5 + $0x104] sm:$0xf]
    %v578 = vld [vmem:[#allocation5 + $0x11c] sm:$0xf]
    %v579 = vld [vmem:[#allocation5 + $0x134] sm:$0xf]
    %v580 = vld [vmem:[#allocation5 + $0x14c] sm:$0xf]
    %v581 = vld [vmem:[#allocation5 + $0x164] sm:$0xf]
    %v582 = vld [vmem:[#allocation5 + $0x17c] sm:$0xf]
    %v583 = vld [vmem:[#allocation7 + $0x5] sm:$0x1]
    %v585 = vlaneseq
    %v586 = vshrl.u32 %v585, 7
    %v587 = vsub.s32 0, %v586
    %v588 = vrot.slane %v583, %v587
    %v606 = vunpack.c.l.b16 %v567
    %v607 = vunpack.c.l.b16 %v568
    %v608 = vunpack.c.l.b16 %v569
    %v609 = vunpack.c.l.b16 %v570
    %v610 = vunpack.c.l.b16 %v571
    %v611 = vunpack.c.l.b16 %v572
    %v612 = vunpack.c.l.b16 %v573
    %v613 = vunpack.c.l.b16 %v574
    %v614 = vunpack.c.l.b16 %v575
    %v615 = vunpack.c.l.b16 %v576
    %v616 = vunpack.c.l.b16 %v577
    %v617 = vunpack.c.l.b16 %v578
    %v618 = vunpack.c.l.b16 %v579
    %v619 = vunpack.c.l.b16 %v580
    %v620 = vunpack.c.l.b16 %v581
    %v621 = vunpack.c.l.b16 %v582
    %v622 = vpack.c.b16 %v607, %v606
    %v623 = vpack.c.b16 %v609, %v608
    %v624 = vpack.c.b16 %v611, %v610
    %v625 = vpack.c.b16 %v613, %v612
    %v626 = vpack.c.b16 %v615, %v614
    %v627 = vpack.c.b16 %v617, %v616
    %v628 = vpack.c.b16 %v619, %v618
    %v629 = vpack.c.b16 %v621, %v620
    %638 = vmatprep.subr.bf16.mxu0 0
    %639 = vmatpush1.bf16.msra.mxu0 %v629
    %640 = vmatprep.subr.bf16.mxu0 0
    %641 = vmatpush1.bf16.msra.mxu0 %v628
    %642 = vmatprep.subr.bf16.mxu0 0
    %643 = vmatpush1.bf16.msra.mxu0 %v627
    %644 = vmatprep.subr.bf16.mxu0 0
    %645 = vmatpush1.bf16.msra.mxu0 %v626
    %646 = vmatprep.subr.bf16.mxu0 0
    %647 = vmatpush1.bf16.msra.mxu0 %v625
    %648 = vmatprep.subr.bf16.mxu0 0
    %649 = vmatpush1.bf16.msra.mxu0 %v624
    %650 = vmatprep.subr.bf16.mxu0 0
    %651 = vmatpush1.bf16.msra.mxu0 %v623
    %652 = vmatprep.subr.bf16.mxu0 0
    %653 = vmatpush1.bf16.msra.mxu0 %v622
    %654 = vmatprep.subr.bf16.mxu0 0
    %655 = vmatpush2.bf16.msra.mxu0 0
    %656 = vmatprep.subr.bf16.mxu0 0
    %657 = vmatpush2.bf16.msra.mxu0 0
    %658 = vmatprep.subr.bf16.mxu0 0
    %659 = vmatpush2.bf16.msra.mxu0 0
    %660 = vmatprep.subr.bf16.mxu0 0
    %661 = vmatpush2.bf16.msra.mxu0 0
    %662 = vmatprep.subr.bf16.mxu0 0
    %663 = vmatpush2.bf16.msra.mxu0 0
    %664 = vmatprep.subr.bf16.mxu0 0
    %665 = vmatpush2.bf16.msra.mxu0 0
    %666 = vmatprep.subr.bf16.mxu0 0
    %667 = vmatpush2.bf16.msra.mxu0 0
    %668 = vmatprep.subr.bf16.mxu0 0
    %669 = vmatpush2.bf16.msra.mxu0 0
    %670 = vmatprep.mubr.bf16.mxu0 0
    %671 = vmatmul.mubr.bf16.gmra.mxu0 %v566
    %v672 = vpop.f32.mrf.mxu0
    %v673 = vadd.f32 %v588, %v672
    %v674 = vpop.f32.mrf.mxu0
    %v675 = vpop.f32.mrf.mxu0
    %v676 = vpop.f32.mrf.mxu0
    %677 = vdwg.mxu0
    %678 = vst.msk [vmem:[#allocation8] sm:$0xff] %vm65, %v673
    // Predicated region
    $region26: #{dqn_forward.1} parent=1 // pred_check
      _
    $region27: #{dqn_forward.1} parent=1 // pred_check_branch
      %680 = sbr.rel (0) target = $region29
    $region28: #{dqn_forward.1} parent=1 // pred_region
      %s682 = ssub.s32 128, 32
      %683 = vsyncadd [#allocation4], %s682
      %s684 = sshll.u32 [#allocation8], 4
      %s685 = int_to_ptr.vmem [resolvable:$true] %s684
      %690 = dma.vmem_to_hbm [thread:$0]  %s685, 32, %s3, [#allocation4], 32, 32, 2
    $region29: #{dqn_forward.1} parent=1 // pred_fallthru
      _
    // Predicated region
    $region30: #{dqn_forward.1} parent=1 // pred_check
      _
    $region31: #{dqn_forward.1} parent=1 // pred_check_branch
      %692 = sbr.rel (0) target = $region33
    $region32: #{dqn_forward.1} parent=1 // pred_region
      %693 = dma.done [#allocation4], 128
    $region33: #{dqn_forward.1} parent=1 // pred_fallthru
      _
    %694 = vsyncpa [#allocation3], 1
    %695 = vsyncpa [#allocation6], 1
    %696 = vsyncpa [#allocation4], 1

</llo_original>
